<compile_context>
chip_gen: v6e
topology: v6e:2x2x1
jax: 0.10.0
libtpu: 0.0.40
codegen_flags: <defaults>
</compile_context>

<pallas_src>
import functools
import math

import jax
import jax.numpy as jnp
from jax.experimental import pallas as pl
from jax.experimental.pallas import tpu as pltpu

_GOLDEN = 0x9E3779B9  # odd constant for seed mixing
_MIB = 1024 * 1024


def _hash_u32(x):
    """Cheap 32-bit mixer (one mix round dropped per perf review; pure VPU int ops)."""
    x = x ^ (x >> 16)
    x = x * jnp.uint32(0x7FEB352D)
    x = x ^ (x >> 15)
    return x


def _dropout_keep_mask(seed_u32, row0, col0, shape, hidden_size, keep_threshold):
    """Keep-mask as a pure function of (seed, global row, global col).

    Tiling / padding independent.  Row term is a (tm,1) vector broadcast-added to a
    (1,tc) column iota, so per-element VPU work is add + hash + compare.  All index
    arithmetic is uint32 (no reliance on int32 wrap for M*H > 2^31).
    """
    tm, tc = shape
    rows = (row0 + jax.lax.broadcasted_iota(jnp.int32, (tm, 1), 0)).astype(jnp.uint32)
    cols = (col0 + jax.lax.broadcasted_iota(jnp.int32, (1, tc), 1)).astype(jnp.uint32)
    row_term = rows * jnp.uint32(hidden_size) + seed_u32 * jnp.uint32(_GOLDEN)
    bits = _hash_u32(row_term + cols)
    return bits < jnp.uint32(keep_threshold)  # uint32 threshold compare, no float math


def _ff_resident_kernel(seed_ref, x_ref, w1_ref, b1_ref, w2_ref, b2_ref, o_ref,
                        *, tm, hidden_size, dropout_p, training, keep_threshold,
                        inv_keep, matmul_dtype):
    """Weights-resident path: single grid axis over row tiles; weights DMA'd once."""
    # fc1: bf16 MXU operands (x pre-cast in the wrapper), f32 accumulate.
    h = jnp.dot(x_ref[...], w1_ref[...], preferred_element_type=jnp.float32)
    h = jnp.maximum(h + b1_ref[...], 0.0)

    if training and dropout_p > 0.0:
        keep = _dropout_keep_mask(
            seed_ref[0].astype(jnp.uint32),
            pl.program_id(0) * tm, 0,
            h.shape, hidden_size, keep_threshold)
        h = jnp.where(keep, h, 0.0)

    out = jnp.dot(h.astype(matmul_dtype), w2_ref[...],
                  preferred_element_type=jnp.float32)
    if training and dropout_p > 0.0:
        out = out * inv_keep          # one multiply on (tm, E), not (tm, H)
    o_ref[...] = (out + b2_ref[...]).astype(o_ref.dtype)


def _ff_streamed_kernel(seed_ref, x_ref, w1_ref, b1_ref, w2_ref, b2_ref, o_ref,
                        acc_ref, *, tm, th, hidden_size, dropout_p, training,
                        keep_threshold, inv_keep, matmul_dtype):
    """Streamed path: H tiled as innermost 'arbitrary' axis, f32 accumulator scratch."""
    j = pl.program_id(1)

    h = jnp.dot(x_ref[...], w1_ref[...], preferred_element_type=jnp.float32)
    h = jnp.maximum(h + b1_ref[...], 0.0)

    if training and dropout_p > 0.0:
        keep = _dropout_keep_mask(
            seed_ref[0].astype(jnp.uint32),
            pl.program_id(0) * tm, j * th,
            h.shape, hidden_size, keep_threshold)
        h = jnp.where(keep, h, 0.0)

    partial = jnp.dot(h.astype(matmul_dtype), w2_ref[...],
                      preferred_element_type=jnp.float32)

    # Conditional first write: saves the (tm,E) zero-init store + first read pass.
    @pl.when(j == 0)
    def _():
        acc_ref[...] = partial

    @pl.when(j != 0)
    def _():
        acc_ref[...] += partial

    @pl.when(j == pl.num_programs(1) - 1)
    def _():
        out = acc_ref[...]
        if training and dropout_p > 0.0:
            out = out * inv_keep      # one multiply on (tm, E)
        o_ref[...] = (out + b2_ref[...]).astype(o_ref.dtype)


def _vmem_capacity_bytes():
    try:
        cap = int(getattr(pltpu.get_tpu_info(), "vmem_capacity_bytes", 0))
        if cap > 0:
            return cap
    except Exception:
        pass
    return 64 * _MIB  # conservative default (v7x-sized) if the query is unavailable


def _plan(M, E, H):
    """Generation-aware tiling plan (128 MiB VMEM on v5e/v6e vs 64 MiB on v7x)."""
    cap = _vmem_capacity_bytes()
    small_vmem = cap < 100 * _MIB                           # v7x-like budget
    vmem_limit = min((56 if small_vmem else 100) * _MIB, cap)
    resident_budget = (40 if small_vmem else 90) * _MIB
    row_cap = 256 if small_vmem else (512 if E > 2048 else 1024)
    hidden_cap = 512 if small_vmem else 1024

    row_cands, seen = [], set()
    for c in (1024, 512, 256, 128, 64, 32, 16, 8):
        if c > row_cap:
            continue
        t = min(c, M)
        if t not in seen:
            seen.add(t)
            row_cands.append(t)
    if not row_cands:
        row_cands = [M]

    def resident_fp(tm):
        # W1+W2 bf16 (x2 pipeline buffers, conservative), bf16 x in + f32 out (both
        # double-buffered), (tm,H) f32+bf16 hidden temps, (tm,E) f32 result temp.
        return (2 * 2 * E * H * 2 + 2 * tm * E * 2 + 2 * tm * E * 4
                + tm * H * 6 + tm * E * 4 + 4 * (H + E) * 4)

    for tm in row_cands:
        if resident_fp(tm) <= resident_budget:
            m_pad = -(-M // tm) * tm
            return dict(resident=True, tm=tm, th=H, m_pad=m_pad, h_pad=H,
                        vmem_limit=vmem_limit)

    # Streamed path: pad H up to a 256 multiple (MXU-filling tiles; no th=128 fallback).
    h_pad = -(-H // 256) * 256
    th_cands = [t for t in (1024, 512, 256) if t <= hidden_cap and h_pad % t == 0]
    if not th_cands:
        th_cands = [h_pad]

    def streamed_fp(tm, th):
        return (2 * 2 * E * th * 2 + 2 * tm * E * 2 + 2 * tm * E * 4
                + tm * E * 4                           # f32 accumulator scratch
                + tm * th * 6 + tm * E * 4 + 4 * (th + E) * 4)

    for tm in row_cands:
        for th in th_cands:
            if streamed_fp(tm, th) <= vmem_limit - 8 * _MIB:
                m_pad = -(-M // tm) * tm
                return dict(resident=False, tm=tm, th=th, m_pad=m_pad, h_pad=h_pad,
                            vmem_limit=vmem_limit)

    tm, th = row_cands[-1], th_cands[-1]
    m_pad = -(-M // tm) * tm
    return dict(resident=False, tm=tm, th=th, m_pad=m_pad, h_pad=h_pad,
                vmem_limit=vmem_limit)


def feed_forward(x, w1, b1, w2, b2, *, dropout_p=0.1, training=True, seed=0,
                 matmul_dtype=jnp.bfloat16):
    """x: (B, S, E).  w1: (E, H), b1: (H,), w2: (H, E), b2: (E,)."""
    B, S, E = x.shape
    H = w1.shape[1]
    M = B * S
    out_dtype = x.dtype

    plan = _plan(M, E, H)
    tm, th = plan["tm"], plan["th"]
    m_pad, h_pad = plan["m_pad"], plan["h_pad"]
    resident = plan["resident"]

    # Flatten, pad rows, cast x to bf16 in the wrapper (halves DMA + VMEM, removes
    # the per-step in-kernel cast).
    x2 = x.reshape(M, E)
    if m_pad != M:
        x2 = jnp.pad(x2, ((0, m_pad - M), (0, 0)))
    x2 = x2.astype(matmul_dtype)

    w1_c = w1.astype(matmul_dtype)        # halves weight DMA + VMEM vs f32
    w2_c = w2.astype(matmul_dtype)
    b1_2 = b1.reshape(1, H).astype(jnp.float32)
    b2_2 = b2.reshape(1, E).astype(jnp.float32)
    if h_pad != H:
        # Zero-padded hidden columns give relu(0 + 0) = 0 -> contribute nothing to fc2.
        w1_c = jnp.pad(w1_c, ((0, 0), (0, h_pad - H)))
        b1_2 = jnp.pad(b1_2, ((0, 0), (0, h_pad - H)))
        w2_c = jnp.pad(w2_c, ((0, h_pad - H), (0, 0)))

    seed_arr = jnp.array([seed], dtype=jnp.int32)
    keep_prob = 1.0 - float(dropout_p)
    keep_threshold = min(int(round(keep_prob * 2**32)), 2**32 - 1)
    inv_keep = (1.0 / keep_prob) if keep_prob > 0.0 else 0.0

    common = dict(tm=tm, hidden_size=H, dropout_p=dropout_p, training=training,
                  keep_threshold=keep_threshold, inv_keep=inv_keep,
                  matmul_dtype=matmul_dtype)

    if resident:
        kernel = functools.partial(_ff_resident_kernel, **common)
        grid = (m_pad // tm,)
        in_specs = [
            pl.BlockSpec((tm, E), lambda i, s: (i, 0)),        # x row tile
            pl.BlockSpec((E, h_pad), lambda i, s: (0, 0)),     # W1 (resident, 1 DMA)
            pl.BlockSpec((1, h_pad), lambda i, s: (0, 0)),     # b1
            pl.BlockSpec((h_pad, E), lambda i, s: (0, 0)),     # W2 (resident, 1 DMA)
            pl.BlockSpec((1, E), lambda i, s: (0, 0)),         # b2
        ]
        out_specs = pl.BlockSpec((tm, E), lambda i, s: (i, 0))
        scratch_shapes = []
        dims = ("parallel",)
        weight_streams = 1
    else:
        kernel = functools.partial(_ff_streamed_kernel, th=th, **common)
        grid = (m_pad // tm, h_pad // th)
        in_specs = [
            pl.BlockSpec((tm, E), lambda i, j, s: (i, 0)),     # x row tile
            pl.BlockSpec((E, th), lambda i, j, s: (0, j)),     # W1 column tile
            pl.BlockSpec((1, th), lambda i, j, s: (0, j)),     # b1 tile
            pl.BlockSpec((th, E), lambda i, j, s: (j, 0)),     # W2 row tile
            pl.BlockSpec((1, E), lambda i, j, s: (0, 0)),      # b2
        ]
        out_specs = pl.BlockSpec((tm, E), lambda i, j, s: (i, 0))
        scratch_shapes = [pltpu.VMEM((tm, E), jnp.float32)]    # fc2 accumulator
        dims = ("parallel", "arbitrary")                       # M parallel, H reduce
        weight_streams = m_pad // tm                           # re-streamed per row tile

    flops = 4 * m_pad * E * h_pad
    weight_bytes = (w1_c.size * w1_c.dtype.itemsize
                    + w2_c.size * w2_c.dtype.itemsize) * weight_streams
    bytes_accessed = (x2.size * x2.dtype.itemsize + weight_bytes
                      + b1_2.size * 4 + b2_2.size * 4
                      + m_pad * E * jnp.dtype(out_dtype).itemsize)

    out2 = pl.pallas_call(
        kernel,
        out_shape=jax.ShapeDtypeStruct((m_pad, E), out_dtype),
        grid_spec=pltpu.PrefetchScalarGridSpec(
            num_scalar_prefetch=1,
            grid=grid,
            in_specs=in_specs,
            out_specs=out_specs,
            scratch_shapes=scratch_shapes,
        ),
        compiler_params=pltpu.CompilerParams(
            dimension_semantics=dims,
            vmem_limit_bytes=plan["vmem_limit"]),
        cost_estimate=pl.CostEstimate(flops=flops, transcendentals=0,
                                      bytes_accessed=bytes_accessed),
    )(seed_arr, x2, w1_c, b1_2, w2_c, b2_2)

    return out2[:M].reshape(B, S, E)


def _init_params(key, embedding_size, hidden_size):
    """Deterministic init mimicking nn.Linear's kaiming-uniform defaults."""
    k1, k2, k3, k4 = jax.random.split(key, 4)
    bound1 = 1.0 / math.sqrt(embedding_size)
    bound2 = 1.0 / math.sqrt(hidden_size)
    w1 = jax.random.uniform(k1, (embedding_size, hidden_size),
                            minval=-bound1, maxval=bound1, dtype=jnp.float32)
    b1 = jax.random.uniform(k2, (hidden_size,),
                            minval=-bound1, maxval=bound1, dtype=jnp.float32)
    w2 = jax.random.uniform(k3, (hidden_size, embedding_size),
                            minval=-bound2, maxval=bound2, dtype=jnp.float32)
    b2 = jax.random.uniform(k4, (embedding_size,),
                            minval=-bound2, maxval=bound2, dtype=jnp.float32)
    return w1, b1, w2, b2


if __name__ == "__main__":
    B, S, E, H = 2, 8, 32, 64
    key = jax.random.PRNGKey(0)
    kx, kp = jax.random.split(key)
    x = jax.random.normal(kx, (B, S, E), dtype=jnp.float32)
    w1, b1, w2, b2 = _init_params(kp, E, H)

    M = B * S
    x2 = x.reshape(M, E)
    xb = x2.astype(jnp.bfloat16)
    w1b = w1.astype(jnp.bfloat16)
    w2b = w2.astype(jnp.bfloat16)

    # --- eval mode (dropout = identity); reference uses the same bf16 matmul casts ---
    out_eval = feed_forward(x, w1, b1, w2, b2, dropout_p=0.1, training=False)
    jax.block_until_ready(out_eval)
    h_ref = jnp.maximum(
        jnp.dot(xb, w1b, preferred_element_type=jnp.float32) + b1, 0.0)
    ref_eval = jnp.dot(h_ref.astype(jnp.bfloat16), w2b,
                       preferred_element_type=jnp.float32) + b2
    assert jnp.allclose(out_eval.reshape(M, E), ref_eval, atol=2e-2, rtol=2e-2)

    # --- training mode (in-kernel dropout), checked against the same hash mask ---
    # TODO(synk): dropout uses a deterministic counter-based hash, so it will not
    # bit-match torch's Bernoulli draws (rate and 1/(1-p) scaling are identical).
    seed = 7
    p = 0.1
    out_train = feed_forward(x, w1, b1, w2, b2, dropout_p=p, training=True, seed=seed)
    jax.block_until_ready(out_train)

    keep_threshold = min(int(round((1.0 - p) * 2**32)), 2**32 - 1)
    rows = jnp.arange(M, dtype=jnp.uint32)[:, None]
    cols = jnp.arange(H, dtype=jnp.uint32)[None, :]
    flat = rows * jnp.uint32(H) + cols
    seed_mix = jnp.asarray(seed, dtype=jnp.uint32) * jnp.uint32(_GOLDEN)
    keep = _hash_u32(flat + seed_mix) < jnp.uint32(keep_threshold)
    h_drop = jnp.where(keep, h_ref, 0.0)
    ref_train = (jnp.dot(h_drop.astype(jnp.bfloat16), w2b,
                         preferred_element_type=jnp.float32) * (1.0 / (1.0 - p)) + b2)
    assert out_train.shape == (B, S, E)
    assert jnp.allclose(out_train.reshape(M, E), ref_train, atol=2e-2, rtol=2e-2)

    print("KERNEL_OK")
</pallas_src>

<mosaic_0001>
module attributes {stable_mosaic.version = 11 : i64} {
  func.func @_ff_resident_kernel(%arg0: i32, %arg1: memref<1xi32, #tpu.memory_space<smem>>, %arg2: memref<16x32xbf16, #tpu.memory_space<vmem>>, %arg3: memref<32x64xbf16, #tpu.memory_space<vmem>>, %arg4: memref<1x64xf32, #tpu.memory_space<vmem>>, %arg5: memref<64x32xbf16, #tpu.memory_space<vmem>>, %arg6: memref<1x32xf32, #tpu.memory_space<vmem>>, %arg7: memref<16x32xf32, #tpu.memory_space<vmem>>) attributes {dimension_semantics = [#tpu.dimension_semantics<parallel>], iteration_bounds = array<i64: 1>, scalar_prefetch = 1 : i64, scratch_operands = 0 : i64, tpu.core_type = #tpu.core_type<tc>, window_params = [{transform_indices = @transform_0, window_bounds = array<i64: 16, 32>}, {pipeline_mode = #tpu.pipeline_mode<synchronous>, transform_indices = @transform_1, window_bounds = array<i64: 32, 64>}, {pipeline_mode = #tpu.pipeline_mode<synchronous>, transform_indices = @transform_2, window_bounds = array<i64: 1, 64>}, {pipeline_mode = #tpu.pipeline_mode<synchronous>, transform_indices = @transform_3, window_bounds = array<i64: 64, 32>}, {pipeline_mode = #tpu.pipeline_mode<synchronous>, transform_indices = @transform_4, window_bounds = array<i64: 1, 32>}, {transform_indices = @transform_5, window_bounds = array<i64: 16, 32>}]} {
    %c0 = arith.constant 0 : index
    %c0_0 = arith.constant 0 : index
    %0 = vector.load %arg2[%c0, %c0_0] : memref<16x32xbf16, #tpu.memory_space<vmem>>, vector<16x32xbf16>
    %c0_1 = arith.constant 0 : index
    %c0_2 = arith.constant 0 : index
    %1 = vector.load %arg3[%c0_1, %c0_2] : memref<32x64xbf16, #tpu.memory_space<vmem>>, vector<32x64xbf16>
    %cst = arith.constant dense<0.000000e+00> : vector<16x64xf32>
    %2 = tpu.matmul %0, %1, %cst {dimension_numbers = #tpu.dot_dimension_numbers<[1], [0], [0], [1], [0, 0, 1, 1], [], []>} : vector<16x32xbf16>, vector<32x64xbf16>, vector<16x64xf32> -> vector<16x64xf32>
    %c0_3 = arith.constant 0 : index
    %c0_4 = arith.constant 0 : index
    %3 = vector.load %arg4[%c0_3, %c0_4] : memref<1x64xf32, #tpu.memory_space<vmem>>, vector<1x64xf32>
    %4 = vector.broadcast %3 : vector<1x64xf32> to vector<16x64xf32>
    %5 = arith.addf %2, %4 : vector<16x64xf32>
    %cst_5 = arith.constant 0.000000e+00 : f32
    %6 = vector.broadcast %cst_5 : f32 to vector<16x64xf32>
    %7 = arith.maximumf %5, %6 : vector<16x64xf32>
    %8 = arith.truncf %7 : vector<16x64xf32> to vector<16x64xbf16>
    %c0_6 = arith.constant 0 : index
    %c0_7 = arith.constant 0 : index
    %9 = vector.load %arg5[%c0_6, %c0_7] : memref<64x32xbf16, #tpu.memory_space<vmem>>, vector<64x32xbf16>
    %cst_8 = arith.constant dense<0.000000e+00> : vector<16x32xf32>
    %10 = tpu.matmul %8, %9, %cst_8 {dimension_numbers = #tpu.dot_dimension_numbers<[1], [0], [0], [1], [0, 0, 1, 1], [], []>} : vector<16x64xbf16>, vector<64x32xbf16>, vector<16x32xf32> -> vector<16x32xf32>
    %c0_9 = arith.constant 0 : index
    %c0_10 = arith.constant 0 : index
    %11 = vector.load %arg6[%c0_9, %c0_10] : memref<1x32xf32, #tpu.memory_space<vmem>>, vector<1x32xf32>
    %12 = vector.broadcast %11 : vector<1x32xf32> to vector<16x32xf32>
    %13 = arith.addf %10, %12 : vector<16x32xf32>
    %c0_11 = arith.constant 0 : index
    %c0_12 = arith.constant 0 : index
    %14 = vector.load %arg7[%c0_11, %c0_12] : memref<16x32xf32, #tpu.memory_space<vmem>>, vector<16x32xf32>
    tpu.vector_store %arg7[%c0_11, %c0_12], %13 {strides = array<i32>} : memref<16x32xf32, #tpu.memory_space<vmem>>, vector<16x32xf32>,
    return
  }
  func.func @transform_0(%arg0: i32, %arg1: memref<1xi32, #tpu.memory_space<smem>>) -> (i32, i32) {
    %c0_i32 = arith.constant 0 : i32
    %c0_i32_0 = arith.constant 0 : i32
    return %arg0, %c0_i32 : i32, i32
  }
  func.func @transform_1(%arg0: i32, %arg1: memref<1xi32, #tpu.memory_space<smem>>) -> (i32, i32) {
    %c0_i32 = arith.constant 0 : i32
    %c0_i32_0 = arith.constant 0 : i32
    %c0_i32_1 = arith.constant 0 : i32
    return %c0_i32, %c0_i32_0 : i32, i32
  }
  func.func @transform_2(%arg0: i32, %arg1: memref<1xi32, #tpu.memory_space<smem>>) -> (i32, i32) {
    %c0_i32 = arith.constant 0 : i32
    %c0_i32_0 = arith.constant 0 : i32
    %c0_i32_1 = arith.constant 0 : i32
    return %c0_i32, %c0_i32_0 : i32, i32
  }
  func.func @transform_3(%arg0: i32, %arg1: memref<1xi32, #tpu.memory_space<smem>>) -> (i32, i32) {
    %c0_i32 = arith.constant 0 : i32
    %c0_i32_0 = arith.constant 0 : i32
    %c0_i32_1 = arith.constant 0 : i32
    return %c0_i32, %c0_i32_0 : i32, i32
  }
  func.func @transform_4(%arg0: i32, %arg1: memref<1xi32, #tpu.memory_space<smem>>) -> (i32, i32) {
    %c0_i32 = arith.constant 0 : i32
    %c0_i32_0 = arith.constant 0 : i32
    %c0_i32_1 = arith.constant 0 : i32
    return %c0_i32, %c0_i32_0 : i32, i32
  }
  func.func @transform_5(%arg0: i32, %arg1: memref<1xi32, #tpu.memory_space<smem>>) -> (i32, i32) {
    %c0_i32 = arith.constant 0 : i32
    %c0_i32_0 = arith.constant 0 : i32
    return %arg0, %c0_i32 : i32, i32
  }
}

</mosaic_0001>

<llo_original>
// kernel: tpu_custom_call.1
$region0: #{tpu_custom_call.1}
  #allocation0 [shape = 'u32[]', space=smem, size = 0x4, offset = 0x4, fixed_abs, tag = 'smem constant byte address 0x4 - core index']
  #allocation1 [shape = 'u32[144,128]{1,0:T(1,128)}', space=vmem, size = 0x12000, scoped, tag = 'internal scratch']
  #allocation2 [shape = 's32[1]{0}', space=sflag, size = 0x4, scoped, tag = 'scoped memory for tpu_custom_call.1']
  #allocation3 [shape = 's32[1]{0:T(128)S(6)}', space=smem, size = 0x200, scoped, tag = 'prefetched SMEM operand 0']
  %s0 = inlined_call_operand.<no memory space> [shape: s32[1], index: 0, kind: input, shape index: {}]
  %s1 = inlined_call_operand.vmem [shape: bf16[16,32], index: 1, kind: input, shape index: {}]
  %s2 = inlined_call_operand.vmem [shape: bf16[32,64], index: 2, kind: input, shape index: {}]
  %s3 = inlined_call_operand.vmem [shape: f32[1,64], index: 3, kind: input, shape index: {}]
  %s4 = inlined_call_operand.vmem [shape: bf16[64,32], index: 4, kind: input, shape index: {}]
  %s5 = inlined_call_operand.vmem [shape: f32[1,32], index: 5, kind: input, shape index: {}]
  %s6 = inlined_call_operand.hbm [shape: f32[16,32], index: 6, kind: output, shape index: {}]
  %s7 = sld [smem:[#allocation0]]
  $region30: #{tpu_custom_call.1} parent=0
    _
  %s9 = ssub.s32 1, %s7
  %s10 = scalar_select 0, %s9, %s7
  %11 = sst [smem:[#allocation3]] %s0
  $region1: #{tpu_custom_call.1} parent=0
    #allocation4 [shape = 'u8[8192]{0}', space=vmem, size = 0x2000, scoped, tag = 'output window, operand 0, single buffered']
    #allocation5 [shape = 's32[1]{0}', space=sflag, size = 0x4, scoped, tag = 'scoped memory for tpu_custom_call.1']
    %12 = vsyncpa [#allocation5], 0
    // Predicated region
    $region2: #{tpu_custom_call.1} parent=1 // pred_check
      _
    $region3: #{tpu_custom_call.1} parent=1 // pred_check_branch
      %14 = sbr.rel (0) target = $region5
    $region4: #{tpu_custom_call.1} parent=1 // pred_region
      _
    $region5: #{tpu_custom_call.1} parent=1 // pred_fallthru
      _
    // Predicated region
    $region6: #{tpu_custom_call.1} parent=1 // pred_check
      _
    $region7: #{tpu_custom_call.1} parent=1 // pred_check_branch
      %16 = sbr.rel (0) target = $region9
    $region8: #{tpu_custom_call.1} parent=1 // pred_region
      _
    $region9: #{tpu_custom_call.1} parent=1 // pred_fallthru
      _
    // Predicated region
    $region10: #{tpu_custom_call.1} parent=1 // pred_check
      _
    $region11: #{tpu_custom_call.1} parent=1 // pred_check_branch
      %18 = sbr.rel (0) target = $region13
    $region12: #{tpu_custom_call.1} parent=1 // pred_region
      _
    $region13: #{tpu_custom_call.1} parent=1 // pred_fallthru
      _
    // Predicated region
    $region14: #{tpu_custom_call.1} parent=1 // pred_check
      _
    $region15: #{tpu_custom_call.1} parent=1 // pred_check_branch
      %20 = sbr.rel (0) target = $region17
    $region16: #{tpu_custom_call.1} parent=1 // pred_region
      _
    $region17: #{tpu_custom_call.1} parent=1 // pred_fallthru
      _
    // Predicated region
    $region18: #{tpu_custom_call.1} parent=1 // pred_check
      _
    $region19: #{tpu_custom_call.1} parent=1 // pred_check_branch
      %22 = sbr.rel (0) target = $region21
    $region20: #{tpu_custom_call.1} parent=1 // pred_region
      _
    $region21: #{tpu_custom_call.1} parent=1 // pred_fallthru
      _
    %v24 = vld [vmem:[%s1] sm:$0xf]
    %v25 = vld [vmem:[%s1 + $0x4] sm:$0xf]
    %v26 = vld [vmem:[%s2] sm:$0xf]
    %v27 = vld [vmem:[%s2 + $0x4] sm:$0xf]
    %v28 = vld [vmem:[%s2 + $0x8] sm:$0xf]
    %v29 = vld [vmem:[%s2 + $0xc] sm:$0xf]
    %v30 = vld [vmem:[%s3] sm:$0x1]
    %v32 = vlaneseq
    %v33 = vshrl.u32 %v32, 7
    %v34 = vsub.s32 0, %v33
    %v35 = vrot.slane %v30, %v34
    %v39 = vunpack.c.l.b16 %v24
    %v40 = vunpack.c.l.b16 %v25
    %v41 = vpack.c.b16 %v40, %v39
    %v46 = vunpack.c.l.b16 %v26
    %v47 = vunpack.c.l.b16 %v27
    %v48 = vunpack.c.l.b16 %v28
    %v49 = vunpack.c.l.b16 %v29
    %v50 = vpack.c.b16 %v47, %v46
    %v51 = vpack.c.b16 %v49, %v48
    %vm54 = vcmask 261120
    %v56 = vsel %vm54, %v41, 0
    %58 = vmatprep.subr.bf16.mxu0 0
    %59 = vmatpush1.bf16.msra.mxu0 0
    %60 = vmatprep.subr.bf16.mxu0 0
    %61 = vmatpush1.bf16.msra.mxu0 0
    %62 = vmatprep.subr.bf16.mxu0 0
    %63 = vmatpush1.bf16.msra.mxu0 0
    %64 = vmatprep.subr.bf16.mxu0 0
    %65 = vmatpush1.bf16.msra.mxu0 0
    %66 = vmatprep.subr.bf16.mxu0 0
    %67 = vmatpush1.bf16.msra.mxu0 0
    %68 = vmatprep.subr.bf16.mxu0 0
    %69 = vmatpush1.bf16.msra.mxu0 0
    %70 = vmatprep.subr.bf16.mxu0 0
    %71 = vmatpush1.bf16.msra.mxu0 %v51
    %72 = vmatprep.subr.bf16.mxu0 0
    %73 = vmatpush1.bf16.msra.mxu0 %v50
    %74 = vmatprep.subr.bf16.mxu0 0
    %75 = vmatpush2.bf16.msra.mxu0 0
    %76 = vmatprep.subr.bf16.mxu0 0
    %77 = vmatpush2.bf16.msra.mxu0 0
    %78 = vmatprep.subr.bf16.mxu0 0
    %79 = vmatpush2.bf16.msra.mxu0 0
    %80 = vmatprep.subr.bf16.mxu0 0
    %81 = vmatpush2.bf16.msra.mxu0 0
    %82 = vmatprep.subr.bf16.mxu0 0
    %83 = vmatpush2.bf16.msra.mxu0 0
    %84 = vmatprep.subr.bf16.mxu0 0
    %85 = vmatpush2.bf16.msra.mxu0 0
    %86 = vmatprep.subr.bf16.mxu0 0
    %87 = vmatpush2.bf16.msra.mxu0 0
    %88 = vmatprep.subr.bf16.mxu0 0
    %89 = vmatpush2.bf16.msra.mxu0 0
    %90 = vmatprep.mubr.bf16.mxu0 0
    %91 = vmatmul.mubr.bf16.gmra.mxu0 %v56
    %v92 = vpop.f32.mrf.mxu0
    %v93 = vadd.f32 %v35, %v92
    %v94 = vpop.f32.mrf.mxu0
    %v95 = vpop.f32.mrf.mxu0
    %v96 = vadd.f32 %v35, %v95
    %v97 = vpop.f32.mrf.mxu0
    %98 = vdwg.mxu0
    %v99 = vmax.f32 %v93, 0.0
    %v100 = vmax.f32 %v96, 0.0
    %v101 = vpack.c.bf16 %v100, %v99
    %v102 = vld [vmem:[%s4] sm:$0xf]
    %v103 = vld [vmem:[%s4 + $0x4] sm:$0xf]
    %v104 = vld [vmem:[%s4 + $0x8] sm:$0xf]
    %v105 = vld [vmem:[%s4 + $0xc] sm:$0xf]
    %v106 = vld [vmem:[%s4 + $0x10] sm:$0xf]
    %v107 = vld [vmem:[%s4 + $0x14] sm:$0xf]
    %v108 = vld [vmem:[%s4 + $0x18] sm:$0xf]
    %v109 = vld [vmem:[%s4 + $0x1c] sm:$0xf]
    %v110 = vld [vmem:[%s5] sm:$0x1]
    %v112 = vlaneseq
    %v113 = vshrl.u32 %v112, 7
    %v114 = vsub.s32 0, %v113
    %v115 = vrot.slane %v110, %v114
    %v125 = vunpack.c.l.b16 %v102
    %v126 = vunpack.c.l.b16 %v103
    %v127 = vunpack.c.l.b16 %v104
    %v128 = vunpack.c.l.b16 %v105
    %v129 = vunpack.c.l.b16 %v106
    %v130 = vunpack.c.l.b16 %v107
    %v131 = vunpack.c.l.b16 %v108
    %v132 = vunpack.c.l.b16 %v109
    %v133 = vpack.c.b16 %v126, %v125
    %v134 = vpack.c.b16 %v128, %v127
    %v135 = vpack.c.b16 %v130, %v129
    %v136 = vpack.c.b16 %v132, %v131
    %vm141 = vcmask 523264
    %v143 = vsel %vm141, %v101, 0
    %145 = vmatprep.subr.bf16.mxu0 0
    %146 = vmatpush1.bf16.msra.mxu0 0
    %147 = vmatprep.subr.bf16.mxu0 0
    %148 = vmatpush1.bf16.msra.mxu0 0
    %149 = vmatprep.subr.bf16.mxu0 0
    %150 = vmatpush1.bf16.msra.mxu0 0
    %151 = vmatprep.subr.bf16.mxu0 0
    %152 = vmatpush1.bf16.msra.mxu0 0
    %153 = vmatprep.subr.bf16.mxu0 0
    %154 = vmatpush1.bf16.msra.mxu0 %v136
    %155 = vmatprep.subr.bf16.mxu0 0
    %156 = vmatpush1.bf16.msra.mxu0 %v135
    %157 = vmatprep.subr.bf16.mxu0 0
    %158 = vmatpush1.bf16.msra.mxu0 %v134
    %159 = vmatprep.subr.bf16.mxu0 0
    %160 = vmatpush1.bf16.msra.mxu0 %v133
    %161 = vmatprep.subr.bf16.mxu0 0
    %162 = vmatpush2.bf16.msra.mxu0 0
    %163 = vmatprep.subr.bf16.mxu0 0
    %164 = vmatpush2.bf16.msra.mxu0 0
    %165 = vmatprep.subr.bf16.mxu0 0
    %166 = vmatpush2.bf16.msra.mxu0 0
    %167 = vmatprep.subr.bf16.mxu0 0
    %168 = vmatpush2.bf16.msra.mxu0 0
    %169 = vmatprep.subr.bf16.mxu0 0
    %170 = vmatpush2.bf16.msra.mxu0 0
    %171 = vmatprep.subr.bf16.mxu0 0
    %172 = vmatpush2.bf16.msra.mxu0 0
    %173 = vmatprep.subr.bf16.mxu0 0
    %174 = vmatpush2.bf16.msra.mxu0 0
    %175 = vmatprep.subr.bf16.mxu0 0
    %176 = vmatpush2.bf16.msra.mxu0 0
    %177 = vmatprep.mubr.bf16.mxu0 0
    %178 = vmatmul.mubr.bf16.gmra.mxu0 %v143
    %v179 = vpop.f32.mrf.mxu0
    %v180 = vadd.f32 %v115, %v179
    %v181 = vpop.f32.mrf.mxu0
    %v182 = vpop.f32.mrf.mxu0
    %v183 = vadd.f32 %v115, %v182
    %v184 = vpop.f32.mrf.mxu0
    %185 = vdwg.mxu0
    %186 = vst.msk [vmem:[#allocation4] sm:$0xff] %vm54, %v180
    %187 = vst.msk [vmem:[#allocation4 + $0x8] sm:$0xff] %vm54, %v183
    // Predicated region
    $region22: #{tpu_custom_call.1} parent=1 // pred_check
      _
    $region23: #{tpu_custom_call.1} parent=1 // pred_check_branch
      %189 = sbr.rel (0) target = $region25
    $region24: #{tpu_custom_call.1} parent=1 // pred_region
      %s191 = ssub.s32 256, 256
      %192 = vsyncadd [#allocation5], %s191
      %s193 = sshll.u32 [#allocation4], 4
      %s194 = int_to_ptr.vmem [resolvable:$true] %s193
      %199 = dma.vmem_to_hbm [thread:$0]  %s194, 256, %s6, [#allocation5], 128, 128, 8
    $region25: #{tpu_custom_call.1} parent=1 // pred_fallthru
      _
    // Predicated region
    $region26: #{tpu_custom_call.1} parent=1 // pred_check
      _
    $region27: #{tpu_custom_call.1} parent=1 // pred_check_branch
      %201 = sbr.rel (0) target = $region29
    $region28: #{tpu_custom_call.1} parent=1 // pred_region
      %202 = dma.done [#allocation5], 256
    $region29: #{tpu_custom_call.1} parent=1 // pred_fallthru
      _
    %203 = vsyncpa [#allocation5], 1

</llo_original>
